<compile_context>
chip_gen: v6e
topology: v6e:2x2x1
jax: 0.10.0
libtpu: 0.0.40
codegen_flags: <defaults>
</compile_context>

<pallas_src>
import functools

import jax
import jax.numpy as jnp
from jax import lax
from jax.experimental import pallas as pl
from jax.experimental.pallas import tpu as pltpu


VMEM_LIMIT = 48 * 1024 * 1024


def _round_up(x, m):
    return (x + m - 1) // m * m


def _lane_pad(c):
    # conservative VMEM accounting: last dim is padded to 128 lanes
    return _round_up(max(int(c), 1), 128)


# --------------------------------------------------------------------------- #
# Kernel 1: fused out = act(A @ B + bias), K fully resident (K <= ~1k here)    #
# --------------------------------------------------------------------------- #
def _mm_kernel(a_ref, b_ref, bias_ref, o_ref, *, relu):
    out = jnp.dot(a_ref[...], b_ref[...], preferred_element_type=jnp.float32)
    out = out + bias_ref[...]
    if relu:
        out = jnp.maximum(out, 0.0)
    o_ref[...] = out.astype(o_ref.dtype)


def matmul_bias_act(a, b, bias, relu, out_dtype=jnp.bfloat16):
    """a: (M, K), b: (K, N), bias: (N,) -> act(a @ b + bias)."""
    M, K = a.shape
    K2, N = b.shape
    assert K == K2
    a = a.astype(jnp.bfloat16)
    b = b.astype(jnp.bfloat16)
    bias = bias.astype(jnp.float32)

    Np = _round_up(N, 128)
    Kp = _round_up(K, 128)
    Mp8 = _round_up(M, 8)
    TM = min(Mp8, 1024)
    Mp = _round_up(M, TM)

    a_p = jnp.pad(a, ((0, Mp - M), (0, Kp - K)))
    b_p = jnp.pad(b, ((0, Kp - K), (0, Np - N)))
    bias_p = jnp.pad(bias, (0, Np - N)).reshape(1, Np)

    out = pl.pallas_call(
        functools.partial(_mm_kernel, relu=relu),
        out_shape=jax.ShapeDtypeStruct((Mp, Np), out_dtype),
        grid_spec=pltpu.PrefetchScalarGridSpec(
            num_scalar_prefetch=0,
            grid=(Mp // TM,),
            in_specs=[
                pl.BlockSpec((TM, Kp), lambda i: (i, 0)),
                pl.BlockSpec((Kp, Np), lambda i: (0, 0)),
                pl.BlockSpec((1, Np), lambda i: (0, 0)),
            ],
            out_specs=pl.BlockSpec((TM, Np), lambda i: (i, 0)),
        ),
        compiler_params=pltpu.CompilerParams(
            dimension_semantics=("parallel",),
            vmem_limit_bytes=VMEM_LIMIT),
    )(a_p, b_p, bias_p)
    return out[:M, :N]


# --------------------------------------------------------------------------- #
# Kernel 2: fused 3x3x3 conv (stride 1, pad 1) over flattened padded rows      #
#   - input lives in HBM (pl.ANY); each grid step DMAs (tm + 2*P0) rows into a  #
#     double-buffered VMEM scratch and accumulates 27 tap matmuls.              #
# --------------------------------------------------------------------------- #
def _conv_rows_kernel(x_hbm, w_ref, b_ref, mask_ref, o_ref, buf, sem,
                      *, taps, tm, halo, n_tiles, relu):
    idx = pl.program_id(0)
    nsteps = pl.num_programs(0)
    slot = idx % 2

    def issue(step, s):
        n = step // n_tiles
        t = step % n_tiles
        pltpu.make_async_copy(
            x_hbm.at[n, pl.ds(t * tm, tm + halo)],
            buf.at[s], sem.at[s]).start()

    @pl.when(idx == 0)
    def _():
        issue(idx, slot)

    @pl.when(idx + 1 < nsteps)
    def _():
        issue(idx + 1, 1 - slot)

    pltpu.make_async_copy(
        x_hbm.at[0, pl.ds(0, tm + halo)], buf.at[slot], sem.at[slot]).wait()

    xv = buf.at[slot]                                  # (tm + halo, Cin) bf16
    cout = o_ref.shape[-1]
    acc = jnp.zeros((tm, cout), jnp.float32)
    for t, off in enumerate(taps):                     # 27 static tap offsets
        acc = acc + jnp.dot(xv[off:off + tm, :], w_ref[t],
                            preferred_element_type=jnp.float32)
    out = acc + b_ref[...]
    if relu:
        out = jnp.maximum(out, 0.0)
    out = out * mask_ref[...]                          # zero the padding rows
    o_ref[0] = out.astype(o_ref.dtype)


def _pick_tm(mp, halo, cin, cout, budget=20 * 1024 * 1024, cap=8192):
    def cost(t):
        return (2 * (t + halo) * _lane_pad(cin) * 2    # double-buffered bf16 input
                + 2 * t * _lane_pad(cout) * 2          # double-buffered bf16 output
                + t * _lane_pad(cout) * 4)             # f32 accumulator
    full = _round_up(mp, 8)
    best = 8
    t = 8
    while t <= min(cap, full):
        if cost(t) <= budget:
            best = t
        t *= 2
    if full <= cap and cost(full) <= budget:
        best = max(best, full)
    return best


def _conv3x3_rows(x_rows, w, b, mask, *, dims, tm, relu):
    """x_rows: (N, Mq + 2*P0, Cin) bf16 guarded padded-flat rows -> (N, Mq, Cout)."""
    N, R_in, Cin = x_rows.shape
    D, H, W = dims
    Hp, Wp = H + 2, W + 2
    S = Hp * Wp
    P0 = S + Wp + 1
    halo = 2 * P0
    Mq = R_in - halo
    n_tiles = Mq // tm
    Cout = int(w.shape[0])
    if int(w.shape[1]) != Cin:                         # channel-padded input
        w = jnp.pad(w, ((0, 0), (0, Cin - int(w.shape[1])), (0, 0), (0, 0), (0, 0)))
    taps = tuple((kd * Hp + kh) * Wp + kw
                 for kd in range(3) for kh in range(3) for kw in range(3))
    w_r = jnp.transpose(w, (2, 3, 4, 1, 0)).reshape(27, Cin, Cout).astype(jnp.bfloat16)
    b_r = b.reshape(1, Cout).astype(jnp.float32)

    kernel = functools.partial(_conv_rows_kernel, taps=taps, tm=tm, halo=halo,
                               n_tiles=n_tiles, relu=relu)
    out = pl.pallas_call(
        kernel,
        out_shape=jax.ShapeDtypeStruct((N, Mq, Cout), jnp.bfloat16),
        grid_spec=pltpu.PrefetchScalarGridSpec(
            num_scalar_prefetch=0,
            grid=(N * n_tiles,),
            in_specs=[
                pl.BlockSpec(memory_space=pl.ANY),
                pl.BlockSpec((27, Cin, Cout), lambda i: (0, 0, 0)),
                pl.BlockSpec((1, Cout), lambda i: (0, 0)),
                pl.BlockSpec((tm, 1), lambda i: (i % n_tiles, 0)),
            ],
            out_specs=pl.BlockSpec((1, tm, Cout),
                                   lambda i: (i // n_tiles, i % n_tiles, 0)),
            scratch_shapes=[
                pltpu.VMEM((2, tm + halo, Cin), jnp.bfloat16),
                pltpu.SemaphoreType.DMA((2,)),
            ],
        ),
        # "arbitrary": the manual double-buffer priming assumes sequential steps.
        compiler_params=pltpu.CompilerParams(
            dimension_semantics=("arbitrary",),
            vmem_limit_bytes=VMEM_LIMIT),
    )(x_rows, w_r, b_r, mask)
    return out


def conv_block(x, convs):
    """ConvBlock: chain of Conv3d(3, pad=1) + ReLU.  x: (N, D, H, W, C) bf16."""
    N, D, H, W, C = x.shape
    if C % 8:
        cpad = _round_up(C, 8)
        x = jnp.pad(x, ((0, 0), (0, 0), (0, 0), (0, 0), (0, cpad - C)))
        C = cpad
    Dp, Hp, Wp = D + 2, H + 2, W + 2
    S = Hp * Wp
    Mp = Dp * S
    P0 = S + Wp + 1
    cmax = max([C] + [int(w.shape[0]) for (w, _) in convs])
    tm = _pick_tm(Mp, 2 * P0, cmax, cmax)
    Mq = _round_up(Mp, tm)

    rows = jnp.arange(Mq, dtype=jnp.int32)
    dp = rows // S
    rem = rows % S
    hp = rem // Wp
    wp = rem % Wp
    interior = ((dp >= 1) & (dp <= D) & (hp >= 1) & (hp <= H)
                & (wp >= 1) & (wp <= W))
    mask = interior.astype(jnp.float32)[:, None]

    xp = jnp.pad(x, ((0, 0), (1, 1), (1, 1), (1, 1), (0, 0))).reshape(N, Mp, C)
    x_rows = jnp.pad(xp, ((0, 0), (P0, Mq - Mp + P0), (0, 0)))

    y = None
    for (w, b) in convs:
        y = _conv3x3_rows(x_rows, w, b, mask, dims=(D, H, W), tm=tm, relu=True)
        # TODO(synk): the guard-pad between chained convs is still a JAX-side pass;
        # it could be folded into the kernel with a uniform guarded row format.
        x_rows = jnp.pad(y, ((0, 0), (P0, P0), (0, 0)))
    cout = y.shape[-1]
    out = y[:, :Mp].reshape(N, Dp, Hp, Wp, cout)[:, 1:1 + D, 1:1 + H, 1:1 + W, :]
    return out


# --------------------------------------------------------------------------- #
# Kernel 3: fused LFE depthwise 3/5/7 conv (one input read, 3C output)         #
# --------------------------------------------------------------------------- #
def _lfe_dw_kernel(x_hbm, w3_ref, w5_ref, w7_ref, b_ref, o_ref, buf, sem,
                   *, tm, halo, n_tiles, S, Wp):
    idx = pl.program_id(0)
    nsteps = pl.num_programs(0)
    slot = idx % 2

    def issue(step, s):
        n = step // n_tiles
        t = step % n_tiles
        pltpu.make_async_copy(
            x_hbm.at[n, pl.ds(t * tm, tm + halo)],
            buf.at[s], sem.at[s]).start()

    @pl.when(idx == 0)
    def _():
        issue(idx, slot)

    @pl.when(idx + 1 < nsteps)
    def _():
        issue(idx + 1, 1 - slot)

    pltpu.make_async_copy(
        x_hbm.at[0, pl.ds(0, tm + halo)], buf.at[slot], sem.at[slot]).wait()

    xv = buf.at[slot]                                  # (tm + halo, C) bf16
    C = b_ref.shape[-1]
    unit = S + Wp + 1
    for bi, (k, w_ref) in enumerate(((3, w3_ref), (5, w5_ref), (7, w7_ref))):
        pk = k // 2
        base = (3 - pk) * unit

        def body(kd, acc, _k=k, _w=w_ref, _base=base):
            row0 = _base + kd * S
            for kh in range(_k):
                for kw in range(_k):
                    tap = _w[kd, kh * _k + kw]                     # (1, C) f32
                    xs = xv[pl.ds(row0 + kh * Wp + kw, tm), :]     # (tm, C)
                    acc = acc + xs.astype(jnp.float32) * tap
            return acc

        acc = lax.fori_loop(0, k, body, jnp.zeros((tm, C), jnp.float32))
        out = (acc + b_ref[bi]).astype(o_ref.dtype)
        o_ref[0, :, bi * C:(bi + 1) * C] = out


def _pick_tm_dw(mp, halo, c, budget=18 * 1024 * 1024, cap=4096):
    def cost(t):
        return (2 * (t + halo) * _lane_pad(c) * 2
                + 2 * t * _lane_pad(3 * c) * 2
                + 2 * t * _lane_pad(c) * 4)
    full = _round_up(mp, 8)
    best = 8
    t = 8
    while t <= min(cap, full):
        if cost(t) <= budget:
            best = t
        t *= 2
    if full <= cap and cost(full) <= budget:
        best = max(best, full)
    return best


def _lfe_dw(x, dw3, dw5, dw7):
    """Fused depthwise 3/5/7.  x: (N, D, H, W, C) bf16 -> ((N, Mq, 3C), geometry)."""
    N, D, H, W, C = x.shape
    Dp, Hp, Wp = D + 6, H + 6, W + 6
    S = Hp * Wp
    Mp = Dp * S
    P0 = 3 * (S + Wp + 1)
    halo = 2 * P0
    tm = _pick_tm_dw(Mp, halo, C)
    Mq = _round_up(Mp, tm)
    n_tiles = Mq // tm

    xp = jnp.pad(x, ((0, 0), (3, 3), (3, 3), (3, 3), (0, 0))).reshape(N, Mp, C)
    x_rows = jnp.pad(xp, ((0, 0), (P0, Mq - Mp + P0), (0, 0)))

    def prep_w(wb, k):
        w = wb[0].reshape(C, k, k, k)
        w = jnp.transpose(w, (1, 2, 3, 0)).reshape(k, k * k, 1, C)
        return w.astype(jnp.float32)

    w3 = prep_w(dw3, 3)
    w5 = prep_w(dw5, 5)
    w7 = prep_w(dw7, 7)
    b_all = jnp.stack([dw3[1], dw5[1], dw7[1]], axis=0).reshape(3, 1, C)
    b_all = b_all.astype(jnp.float32)

    kernel = functools.partial(_lfe_dw_kernel, tm=tm, halo=halo,
                               n_tiles=n_tiles, S=S, Wp=Wp)
    out = pl.pallas_call(
        kernel,
        out_shape=jax.ShapeDtypeStruct((N, Mq, 3 * C), jnp.bfloat16),
        grid_spec=pltpu.PrefetchScalarGridSpec(
            num_scalar_prefetch=0,
            grid=(N * n_tiles,),
            in_specs=[
                pl.BlockSpec(memory_space=pl.ANY),
                pl.BlockSpec((3, 9, 1, C), lambda i: (0, 0, 0, 0)),
                pl.BlockSpec((5, 25, 1, C), lambda i: (0, 0, 0, 0)),
                pl.BlockSpec((7, 49, 1, C), lambda i: (0, 0, 0, 0)),
                pl.BlockSpec((3, 1, C), lambda i: (0, 0, 0)),
            ],
            out_specs=pl.BlockSpec((1, tm, 3 * C),
                                   lambda i: (i // n_tiles, i % n_tiles, 0)),
            scratch_shapes=[
                pltpu.VMEM((2, tm + halo, C), jnp.bfloat16),
                pltpu.SemaphoreType.DMA((2,)),
            ],
        ),
        compiler_params=pltpu.CompilerParams(
            dimension_semantics=("arbitrary",),
            vmem_limit_bytes=VMEM_LIMIT),
    )(x_rows, w3, w5, w7, b_all)
    return out, (Dp, Hp, Wp, Mp)


# --------------------------------------------------------------------------- #
# Encoder1 blocks (normalization='none', has_residual=False)                   #
# --------------------------------------------------------------------------- #
def down_block(x, wb):
    """DownsamplingConvBlock: k=2, stride=2, pad=0 conv + ReLU == s2d + matmul."""
    w, b = wb
    N, D, H, W, C = x.shape
    D2, H2, W2 = D // 2, H // 2, W // 2
    x = x[:, :2 * D2, :2 * H2, :2 * W2, :]
    cout = int(w.shape[0])
    xr = x.reshape(N, D2, 2, H2, 2, W2, 2, C)
    xr = jnp.transpose(xr, (0, 1, 3, 5, 2, 4, 6, 7)).reshape(N * D2 * H2 * W2, 8 * C)
    w_mat = jnp.transpose(w, (2, 3, 4, 1, 0)).reshape(8 * C, cout)
    out = matmul_bias_act(xr, w_mat, b, relu=True)
    return out.reshape(N, D2, H2, W2, cout)


def lfe_block(x, p):
    """LocalFeatureExtractionModule: fused dw 3/5/7 + (pointwise+fuse folded) matmul."""
    N, D, H, W, C = x.shape
    y_rows, (Dp, Hp, Wp, Mp) = _lfe_dw(x, p['dw3'], p['dw5'], p['dw7'])
    y = y_rows[:, :Mp].reshape(N, Dp, Hp, Wp, 3 * C)[:, 3:3 + D, 3:3 + H, 3:3 + W, :]
    cat = y.reshape(N * D * H * W, 3 * C)

    # out = sum_i x_i @ (Wf_i @ Wpw_i)^T + (b_fuse + sum_i Wf_i @ bpw_i)
    # (valid: no activation/norm between the pointwise and 1x1 fuse convs in torch)
    wf = p['fuse'][0].reshape(p['fuse'][0].shape[0], 3 * C)
    cout = int(wf.shape[0])
    b_eff = p['fuse'][1]
    cols = []
    for i, key in enumerate(('pw3', 'pw5', 'pw7')):
        wpw = p[key][0].reshape(C, C)
        bpw = p[key][1]
        wf_i = wf[:, i * C:(i + 1) * C]
        cols.append(wf_i @ wpw)
        b_eff = b_eff + wf_i @ bpw
    w_big = jnp.concatenate(cols, axis=1)
    out = matmul_bias_act(cat, w_big.T, b_eff, relu=False)
    return out.reshape(N, D, H, W, cout)


def encoder1_forward(x_ncdhw, p):
    x = jnp.transpose(x_ncdhw, (0, 2, 3, 4, 1)).astype(jnp.bfloat16)  # NCDHW->NDHWC
    x1 = conv_block(x, p['block_one'])
    x1_dw = down_block(x1, p['block_one_dw'])
    x1_dw = lfe_block(x1_dw, p['lfe2'])
    x2 = conv_block(x1_dw, p['block_two'])
    x2_dw = down_block(x2, p['block_two_dw'])
    x2_dw = lfe_block(x2_dw, p['lfe3'])
    x3 = conv_block(x2_dw, p['block_three'])
    x3_dw = down_block(x3, p['block_three_dw'])
    x3_dw = lfe_block(x3_dw, p['lfe4'])
    x4 = conv_block(x3_dw, p['block_four'])
    x4_dw = down_block(x4, p['block_four_dw'])
    x5 = conv_block(x4_dw, p['block_five'])
    # TODO(synk): nn.Dropout3d is skipped (has_dropout=False default / eval semantics).
    res = [x1, x2, x3, x4, x5]
    return [jnp.transpose(r, (0, 4, 1, 2, 3)).astype(jnp.float32) for r in res]


# --------------------------------------------------------------------------- #
# Deterministic parameter initialization (shapes from the torch __init__)      #
# --------------------------------------------------------------------------- #
def _init_conv(key, cout, cin, k):
    kw, kb = jax.random.split(key)
    fan_in = cin * k ** 3
    w = jax.random.normal(kw, (cout, cin, k, k, k), jnp.float32) / jnp.sqrt(fan_in)
    b = 0.01 * jax.random.normal(kb, (cout,), jnp.float32)
    return w, b


def _init_dwconv(key, c, k):
    kw, kb = jax.random.split(key)
    fan_in = k ** 3
    w = jax.random.normal(kw, (c, 1, k, k, k), jnp.float32) / jnp.sqrt(fan_in)
    b = 0.01 * jax.random.normal(kb, (c,), jnp.float32)
    return w, b


def _init_lfe(keys, c):
    return {
        'dw3': _init_dwconv(next(keys), c, 3),
        'dw5': _init_dwconv(next(keys), c, 5),
        'dw7': _init_dwconv(next(keys), c, 7),
        'pw3': _init_conv(next(keys), c, c, 1),
        'pw5': _init_conv(next(keys), c, c, 1),
        'pw7': _init_conv(next(keys), c, c, 1),
        'fuse': _init_conv(next(keys), c, 3 * c, 1),
    }


def init_params(key, n_channels=3, nf=16):
    keys = iter(jax.random.split(key, 64))
    p = {}
    p['block_one'] = [_init_conv(next(keys), nf, n_channels, 3)]
    p['block_one_dw'] = _init_conv(next(keys), 2 * nf, nf, 2)
    p['lfe2'] = _init_lfe(keys, 2 * nf)
    p['block_two'] = [_init_conv(next(keys), 2 * nf, 2 * nf, 3) for _ in range(2)]
    p['block_two_dw'] = _init_conv(next(keys), 4 * nf, 2 * nf, 2)
    p['lfe3'] = _init_lfe(keys, 4 * nf)
    p['block_three'] = [_init_conv(next(keys), 4 * nf, 4 * nf, 3) for _ in range(3)]
    p['block_three_dw'] = _init_conv(next(keys), 8 * nf, 4 * nf, 2)
    p['lfe4'] = _init_lfe(keys, 8 * nf)
    p['block_four'] = [_init_conv(next(keys), 8 * nf, 8 * nf, 3) for _ in range(3)]
    p['block_four_dw'] = _init_conv(next(keys), 16 * nf, 8 * nf, 2)
    p['block_five'] = [_init_conv(next(keys), 16 * nf, 16 * nf, 3) for _ in range(3)]
    return p


# --------------------------------------------------------------------------- #
if __name__ == "__main__":
    key = jax.random.PRNGKey(0)
    pkey, xkey = jax.random.split(key)

    # --- self-check 1: fused matmul (bf16 operands, f32 acc)
    ka, kb = jax.random.split(xkey)
    A = jax.random.normal(ka, (100, 70), jnp.float32)
    B = jax.random.normal(kb, (70, 50), jnp.float32)
    bias = jnp.arange(50, dtype=jnp.float32) * 0.1
    A16 = A.astype(jnp.bfloat16).astype(jnp.float32)
    B16 = B.astype(jnp.bfloat16).astype(jnp.float32)
    ref = jnp.maximum(
        jnp.dot(A16, B16, precision=jax.lax.Precision.HIGHEST) + bias, 0.0)
    got = matmul_bias_act(A, B, bias, relu=True, out_dtype=jnp.float32)
    assert jnp.allclose(got, ref, atol=1e-2, rtol=1e-2), "matmul mismatch"

    # --- self-check 2: halo-row 3x3x3 conv kernel vs lax conv
    kc, kd = jax.random.split(ka)
    Cc = 8
    xc = jax.random.normal(kc, (1, 4, 5, 6, Cc), jnp.float32)
    wc, bc = _init_conv(kd, 16, Cc, 3)
    got_c = conv_block(xc.astype(jnp.bfloat16), [(wc, bc)]).astype(jnp.float32)
    xc16 = xc.astype(jnp.bfloat16).astype(jnp.float32)
    wc16 = wc.astype(jnp.bfloat16).astype(jnp.float32)
    ref_c = jax.lax.conv_general_dilated(
        xc16, jnp.transpose(wc16, (2, 3, 4, 1, 0)),
        window_strides=(1, 1, 1), padding="SAME",
        dimension_numbers=("NDHWC", "DHWIO", "NDHWC"),
        precision=jax.lax.Precision.HIGHEST) + bc
    ref_c = jnp.maximum(ref_c, 0.0)
    assert jnp.allclose(got_c, ref_c, atol=3e-2, rtol=3e-2), "conv3x3 mismatch"

    # --- self-check 3: fused depthwise 3/5/7 kernel vs lax grouped convs
    ke, kf = jax.random.split(kb)
    Cd = 8
    xd = jax.random.normal(ke, (1, 3, 4, 5, Cd), jnp.float32)
    kws = jax.random.split(kf, 3)
    dws = {k: _init_dwconv(kk, Cd, k) for k, kk in zip((3, 5, 7), kws)}
    y_rows, (Dp, Hp, Wp, Mp) = _lfe_dw(xd.astype(jnp.bfloat16),
                                       dws[3], dws[5], dws[7])
    y = y_rows[:, :Mp].reshape(1, Dp, Hp, Wp, 3 * Cd)[:, 3:3 + 3, 3:3 + 4, 3:3 + 5, :]
    y = y.astype(jnp.float32)
    xd16 = xd.astype(jnp.bfloat16).astype(jnp.float32)
    for bi, kk in enumerate((3, 5, 7)):
        wdd, bdd = dws[kk]
        rhs = jnp.transpose(wdd.reshape(Cd, kk, kk, kk), (1, 2, 3, 0))[:, :, :, None, :]
        ref_d = jax.lax.conv_general_dilated(
            xd16, rhs, window_strides=(1, 1, 1), padding="SAME",
            dimension_numbers=("NDHWC", "DHWIO", "NDHWC"),
            feature_group_count=Cd,
            precision=jax.lax.Precision.HIGHEST) + bdd
        assert jnp.allclose(y[..., bi * Cd:(bi + 1) * Cd], ref_d,
                            atol=5e-2, rtol=5e-2), f"depthwise k={kk} mismatch"

    # --- full encoder forward (small shapes: 4 stride-2 downsamplings -> 16 -> 1)
    params = init_params(pkey, n_channels=3, nf=16)
    x = jax.random.normal(xkey, (1, 3, 16, 16, 16), jnp.float32)  # NCDHW
    fwd = jax.jit(encoder1_forward)
    outs = jax.block_until_ready(fwd(x, params))

    expected = [(1, 16, 16, 16, 16), (1, 32, 8, 8, 8), (1, 64, 4, 4, 4),
                (1, 128, 2, 2, 2), (1, 256, 1, 1, 1)]
    assert [tuple(o.shape) for o in outs] == expected, \
        f"shape mismatch: {[o.shape for o in outs]}"
    assert all(bool(jnp.all(jnp.isfinite(o))) for o in outs), "non-finite outputs"

    print("KERNEL_OK")
</pallas_src>

<mosaic_0001>
module attributes {stable_mosaic.version = 11 : i64} {
  func.func @_mm_kernel(%arg0: i32, %arg1: memref<104x128xbf16, #tpu.memory_space<vmem>>, %arg2: memref<128x128xbf16, #tpu.memory_space<vmem>>, %arg3: memref<1x128xf32, #tpu.memory_space<vmem>>, %arg4: memref<104x128xf32, #tpu.memory_space<vmem>>) attributes {dimension_semantics = [#tpu.dimension_semantics<parallel>], iteration_bounds = array<i64: 1>, scalar_prefetch = 0 : i64, scratch_operands = 0 : i64, tpu.core_type = #tpu.core_type<tc>, window_params = [{transform_indices = @transform_0, window_bounds = array<i64: 104, 128>}, {pipeline_mode = #tpu.pipeline_mode<synchronous>, transform_indices = @transform_1, window_bounds = array<i64: 128, 128>}, {pipeline_mode = #tpu.pipeline_mode<synchronous>, transform_indices = @transform_2, window_bounds = array<i64: 1, 128>}, {transform_indices = @transform_3, window_bounds = array<i64: 104, 128>}]} {
    %c0 = arith.constant 0 : index
    %c0_0 = arith.constant 0 : index
    %0 = vector.load %arg1[%c0, %c0_0] : memref<104x128xbf16, #tpu.memory_space<vmem>>, vector<104x128xbf16>
    %c0_1 = arith.constant 0 : index
    %c0_2 = arith.constant 0 : index
    %1 = vector.load %arg2[%c0_1, %c0_2] : memref<128x128xbf16, #tpu.memory_space<vmem>>, vector<128x128xbf16>
    %cst = arith.constant dense<0.000000e+00> : vector<104x128xf32>
    %2 = tpu.matmul %0, %1, %cst {dimension_numbers = #tpu.dot_dimension_numbers<[1], [0], [0], [1], [0, 0, 1, 1], [], []>} : vector<104x128xbf16>, vector<128x128xbf16>, vector<104x128xf32> -> vector<104x128xf32>
    %c0_3 = arith.constant 0 : index
    %c0_4 = arith.constant 0 : index
    %3 = vector.load %arg3[%c0_3, %c0_4] : memref<1x128xf32, #tpu.memory_space<vmem>>, vector<1x128xf32>
    %4 = vector.broadcast %3 : vector<1x128xf32> to vector<104x128xf32>
    %5 = arith.addf %2, %4 : vector<104x128xf32>
    %cst_5 = arith.constant 0.000000e+00 : f32
    %6 = vector.broadcast %cst_5 : f32 to vector<104x128xf32>
    %7 = arith.maximumf %5, %6 : vector<104x128xf32>
    %c0_6 = arith.constant 0 : index
    %c0_7 = arith.constant 0 : index
    %8 = vector.load %arg4[%c0_6, %c0_7] : memref<104x128xf32, #tpu.memory_space<vmem>>, vector<104x128xf32>
    tpu.vector_store %arg4[%c0_6, %c0_7], %7 {strides = array<i32>} : memref<104x128xf32, #tpu.memory_space<vmem>>, vector<104x128xf32>,
    return
  }
  func.func @transform_0(%arg0: i32) -> (i32, i32) {
    %c0_i32 = arith.constant 0 : i32
    %c0_i32_0 = arith.constant 0 : i32
    return %arg0, %c0_i32 : i32, i32
  }
  func.func @transform_1(%arg0: i32) -> (i32, i32) {
    %c0_i32 = arith.constant 0 : i32
    %c0_i32_0 = arith.constant 0 : i32
    %c0_i32_1 = arith.constant 0 : i32
    return %c0_i32, %c0_i32_0 : i32, i32
  }
  func.func @transform_2(%arg0: i32) -> (i32, i32) {
    %c0_i32 = arith.constant 0 : i32
    %c0_i32_0 = arith.constant 0 : i32
    %c0_i32_1 = arith.constant 0 : i32
    return %c0_i32, %c0_i32_0 : i32, i32
  }
  func.func @transform_3(%arg0: i32) -> (i32, i32) {
    %c0_i32 = arith.constant 0 : i32
    %c0_i32_0 = arith.constant 0 : i32
    return %arg0, %c0_i32 : i32, i32
  }
}

</mosaic_0001>

<llo_original>
// kernel: tpu_custom_call.1
$region0: #{tpu_custom_call.1}
  #allocation0 [shape = 'u32[]', space=smem, size = 0x4, offset = 0x4, fixed_abs, tag = 'smem constant byte address 0x4 - core index']
  #allocation1 [shape = 'u32[144,128]{1,0:T(1,128)}', space=vmem, size = 0x12000, scoped, tag = 'internal scratch']
  %s0 = inlined_call_operand.hbm [shape: bf16[104,128], index: 0, kind: input, shape index: {}]
  %s1 = inlined_call_operand.hbm [shape: bf16[128,128], index: 1, kind: input, shape index: {}]
  %s2 = inlined_call_operand.vmem [shape: f32[1,128], index: 2, kind: input, shape index: {}]
  %s3 = inlined_call_operand.hbm [shape: f32[104,128], index: 3, kind: output, shape index: {}]
  %s4 = sld [smem:[#allocation0]]
  $region30: #{tpu_custom_call.1} parent=0
    _
  %s6 = ssub.s32 1, %s4
  %s7 = scalar_select 0, %s6, %s4
  $region1: #{tpu_custom_call.1} parent=0
    #allocation2 [shape = 'u8[26624]{0}', space=vmem, size = 0x6800, scoped, tag = 'input window, operand 0, single buffered']
    #allocation3 [shape = 's32[1]{0}', space=sflag, size = 0x4, scoped, tag = 'scoped memory for tpu_custom_call.1']
    #allocation4 [shape = 's32[1]{0}', space=sflag, size = 0x4, scoped, tag = 'scoped memory for tpu_custom_call.1']
    #allocation5 [shape = 'u8[32768]{0}', space=vmem, size = 0x8000, scoped, tag = 'input window, operand 1, single buffered']
    #allocation6 [shape = 's32[1]{0}', space=sflag, size = 0x4, scoped, tag = 'scoped memory for tpu_custom_call.1']
    #allocation7 [shape = 'u8[53248]{0}', space=vmem, size = 0xd000, scoped, tag = 'output window, operand 0, single buffered']
    %8 = vsyncpa [#allocation3], 0
    %9 = vsyncpa [#allocation6], 0
    %10 = vsyncpa [#allocation4], 0
    // Predicated region
    $region2: #{tpu_custom_call.1} parent=1 // pred_check
      _
    $region3: #{tpu_custom_call.1} parent=1 // pred_check_branch
      %12 = sbr.rel (0) target = $region5
    $region4: #{tpu_custom_call.1} parent=1 // pred_region
      %s14 = ssub.s32 832, 832
      %15 = vsyncadd [#allocation3], %s14
      %s16 = sshll.u32 [#allocation2], 4
      %s17 = int_to_ptr.vmem [resolvable:$true] %s16
      %22 = dma.hbm_to_vmem [thread:$0]  %s0, 832, %s17, [#allocation3], 64, 64, 4
    $region5: #{tpu_custom_call.1} parent=1 // pred_fallthru
      _
    // Predicated region
    $region6: #{tpu_custom_call.1} parent=1 // pred_check
      _
    $region7: #{tpu_custom_call.1} parent=1 // pred_check_branch
      %24 = sbr.rel (0) target = $region9
    $region8: #{tpu_custom_call.1} parent=1 // pred_region
      %s26 = ssub.s32 1024, 1024
      %27 = vsyncadd [#allocation6], %s26
      %s28 = sshll.u32 [#allocation5], 4
      %s29 = int_to_ptr.vmem [resolvable:$true] %s28
      %34 = dma.hbm_to_vmem [thread:$0]  %s1, 1024, %s29, [#allocation6], 64, 64, 4
    $region9: #{tpu_custom_call.1} parent=1 // pred_fallthru
      _
    // Predicated region
    $region10: #{tpu_custom_call.1} parent=1 // pred_check
      _
    $region11: #{tpu_custom_call.1} parent=1 // pred_check_branch
      %36 = sbr.rel (0) target = $region13
    $region12: #{tpu_custom_call.1} parent=1 // pred_region
      _
    $region13: #{tpu_custom_call.1} parent=1 // pred_fallthru
      _
    // Predicated region
    $region14: #{tpu_custom_call.1} parent=1 // pred_check
      _
    $region15: #{tpu_custom_call.1} parent=1 // pred_check_branch
      %38 = sbr.rel (0) target = $region17
    $region16: #{tpu_custom_call.1} parent=1 // pred_region
      %39 = dma.done [#allocation3], 832
    $region17: #{tpu_custom_call.1} parent=1 // pred_fallthru
      _
    // Predicated region
    $region18: #{tpu_custom_call.1} parent=1 // pred_check
      _
    $region19: #{tpu_custom_call.1} parent=1 // pred_check_branch
      %41 = sbr.rel (0) target = $region21
    $region20: #{tpu_custom_call.1} parent=1 // pred_region
      %42 = dma.done [#allocation6], 1024
    $region21: #{tpu_custom_call.1} parent=1 // pred_fallthru
      _
    %v44 = vld [vmem:[#allocation2] sm:$0xf]
    %v45 = vld [vmem:[#allocation2 + $0x4] sm:$0xf]
    %v46 = vld [vmem:[#allocation2 + $0x8] sm:$0xf]
    %v47 = vld [vmem:[#allocation2 + $0xc] sm:$0xf]
    %v48 = vld [vmem:[#allocation2 + $0x10] sm:$0xf]
    %v49 = vld [vmem:[#allocation2 + $0x14] sm:$0xf]
    %v50 = vld [vmem:[#allocation2 + $0x18] sm:$0xf]
    %v51 = vld [vmem:[#allocation2 + $0x1c] sm:$0xf]
    %v52 = vld [vmem:[#allocation2 + $0x20] sm:$0xf]
    %v53 = vld [vmem:[#allocation2 + $0x24] sm:$0xf]
    %v54 = vld [vmem:[#allocation2 + $0x28] sm:$0xf]
    %v55 = vld [vmem:[#allocation2 + $0x2c] sm:$0xf]
    %v56 = vld [vmem:[#allocation2 + $0x30] sm:$0xf]
    %v57 = vld [vmem:[#allocation5] sm:$0xf]
    %v58 = vld [vmem:[#allocation5 + $0x4] sm:$0xf]
    %v59 = vld [vmem:[#allocation5 + $0x8] sm:$0xf]
    %v60 = vld [vmem:[#allocation5 + $0xc] sm:$0xf]
    %v61 = vld [vmem:[#allocation5 + $0x10] sm:$0xf]
    %v62 = vld [vmem:[#allocation5 + $0x14] sm:$0xf]
    %v63 = vld [vmem:[#allocation5 + $0x18] sm:$0xf]
    %v64 = vld [vmem:[#allocation5 + $0x1c] sm:$0xf]
    %v65 = vld [vmem:[#allocation5 + $0x20] sm:$0xf]
    %v66 = vld [vmem:[#allocation5 + $0x24] sm:$0xf]
    %v67 = vld [vmem:[#allocation5 + $0x28] sm:$0xf]
    %v68 = vld [vmem:[#allocation5 + $0x2c] sm:$0xf]
    %v69 = vld [vmem:[#allocation5 + $0x30] sm:$0xf]
    %v70 = vld [vmem:[#allocation5 + $0x34] sm:$0xf]
    %v71 = vld [vmem:[#allocation5 + $0x38] sm:$0xf]
    %v72 = vld [vmem:[#allocation5 + $0x3c] sm:$0xf]
    %v73 = vld [vmem:[%s2] sm:$0x1]
    %v75 = vlaneseq
    %v76 = vshrl.u32 %v75, 7
    %v77 = vsub.s32 0, %v76
    %v78 = vrot.slane %v73, %v77
    %v93 = vunpack.c.l.b16 %v44
    %v94 = vunpack.c.l.b16 %v45
    %v95 = vunpack.c.l.b16 %v46
    %v96 = vunpack.c.l.b16 %v47
    %v97 = vunpack.c.l.b16 %v48
    %v98 = vunpack.c.l.b16 %v49
    %v99 = vunpack.c.l.b16 %v50
    %v100 = vunpack.c.l.b16 %v51
    %v101 = vunpack.c.l.b16 %v52
    %v102 = vunpack.c.l.b16 %v53
    %v103 = vunpack.c.l.b16 %v54
    %v104 = vunpack.c.l.b16 %v55
    %v105 = vunpack.c.l.b16 %v56
    %v106 = vpack.c.b16 %v94, %v93
    %v107 = vpack.c.b16 %v96, %v95
    %v108 = vpack.c.b16 %v98, %v97
    %v109 = vpack.c.b16 %v100, %v99
    %v110 = vpack.c.b16 %v102, %v101
    %v111 = vpack.c.b16 %v104, %v103
    %v112 = vpack.c.b16 %v105, %v105
    %v136 = vunpack.c.l.b16 %v57
    %v137 = vunpack.c.l.b16 %v58
    %v138 = vunpack.c.l.b16 %v59
    %v139 = vunpack.c.l.b16 %v60
    %v140 = vunpack.c.l.b16 %v61
    %v141 = vunpack.c.l.b16 %v62
    %v142 = vunpack.c.l.b16 %v63
    %v143 = vunpack.c.l.b16 %v64
    %v144 = vunpack.c.l.b16 %v65
    %v145 = vunpack.c.l.b16 %v66
    %v146 = vunpack.c.l.b16 %v67
    %v147 = vunpack.c.l.b16 %v68
    %v148 = vunpack.c.l.b16 %v69
    %v149 = vunpack.c.l.b16 %v70
    %v150 = vunpack.c.l.b16 %v71
    %v151 = vunpack.c.l.b16 %v72
    %v152 = vpack.c.b16 %v137, %v136
    %v153 = vpack.c.b16 %v139, %v138
    %v154 = vpack.c.b16 %v141, %v140
    %v155 = vpack.c.b16 %v143, %v142
    %v156 = vpack.c.b16 %v145, %v144
    %v157 = vpack.c.b16 %v147, %v146
    %v158 = vpack.c.b16 %v149, %v148
    %v159 = vpack.c.b16 %v151, %v150
    %168 = vmatprep.subr.bf16.mxu0 0
    %169 = vmatpush1.bf16.msra.mxu0 %v159
    %170 = vmatprep.subr.bf16.mxu0 0
    %171 = vmatpush1.bf16.msra.mxu0 %v158
    %172 = vmatprep.subr.bf16.mxu0 0
    %173 = vmatpush1.bf16.msra.mxu0 %v157
    %174 = vmatprep.subr.bf16.mxu0 0
    %175 = vmatpush1.bf16.msra.mxu0 %v156
    %176 = vmatprep.subr.bf16.mxu0 0
    %177 = vmatpush1.bf16.msra.mxu0 %v155
    %178 = vmatprep.subr.bf16.mxu0 0
    %179 = vmatpush1.bf16.msra.mxu0 %v154
    %180 = vmatprep.subr.bf16.mxu0 0
    %181 = vmatpush1.bf16.msra.mxu0 %v153
    %182 = vmatprep.subr.bf16.mxu0 0
    %183 = vmatpush1.bf16.msra.mxu0 %v152
    %184 = vmatprep.subr.bf16.mxu0 0
    %185 = vmatpush2.bf16.msra.mxu0 0
    %186 = vmatprep.subr.bf16.mxu0 0
    %187 = vmatpush2.bf16.msra.mxu0 0
    %188 = vmatprep.subr.bf16.mxu0 0
    %189 = vmatpush2.bf16.msra.mxu0 0
    %190 = vmatprep.subr.bf16.mxu0 0
    %191 = vmatpush2.bf16.msra.mxu0 0
    %192 = vmatprep.subr.bf16.mxu0 0
    %193 = vmatpush2.bf16.msra.mxu0 0
    %194 = vmatprep.subr.bf16.mxu0 0
    %195 = vmatpush2.bf16.msra.mxu0 0
    %196 = vmatprep.subr.bf16.mxu0 0
    %197 = vmatpush2.bf16.msra.mxu0 0
    %198 = vmatprep.subr.bf16.mxu0 0
    %199 = vmatpush2.bf16.msra.mxu0 0
    %200 = vmatprep.mubr.bf16.mxu0 0
    %201 = vmatmul.mubr.bf16.gmra.mxu0 %v106
    %v202 = vpop.f32.mrf.mxu0
    %v203 = vadd.f32 %v78, %v202
    %v204 = vpop.f32.mrf.mxu0
    %v205 = vpop.f32.mrf.mxu0
    %v206 = vadd.f32 %v78, %v205
    %v207 = vpop.f32.mrf.mxu0
    %208 = vmatprep.mubr.bf16.mxu0 0
    %209 = vmatmul.mubr.bf16.gmra.mxu0 %v107
    %v210 = vpop.f32.mrf.mxu0
    %v211 = vadd.f32 %v78, %v210
    %v212 = vpop.f32.mrf.mxu0
    %v213 = vpop.f32.mrf.mxu0
    %v214 = vadd.f32 %v78, %v213
    %v215 = vpop.f32.mrf.mxu0
    %216 = vmatprep.mubr.bf16.mxu0 0
    %217 = vmatmul.mubr.bf16.gmra.mxu0 %v108
    %v218 = vpop.f32.mrf.mxu0
    %v219 = vadd.f32 %v78, %v218
    %v220 = vpop.f32.mrf.mxu0
    %v221 = vpop.f32.mrf.mxu0
    %v222 = vadd.f32 %v78, %v221
    %v223 = vpop.f32.mrf.mxu0
    %224 = vmatprep.mubr.bf16.mxu0 0
    %225 = vmatmul.mubr.bf16.gmra.mxu0 %v109
    %v226 = vpop.f32.mrf.mxu0
    %v227 = vadd.f32 %v78, %v226
    %v228 = vpop.f32.mrf.mxu0
    %v229 = vpop.f32.mrf.mxu0
    %v230 = vadd.f32 %v78, %v229
    %v231 = vpop.f32.mrf.mxu0
    %232 = vmatprep.mubr.bf16.mxu0 0
    %233 = vmatmul.mubr.bf16.gmra.mxu0 %v110
    %v234 = vpop.f32.mrf.mxu0
    %v235 = vadd.f32 %v78, %v234
    %v236 = vpop.f32.mrf.mxu0
    %v237 = vpop.f32.mrf.mxu0
    %v238 = vadd.f32 %v78, %v237
    %v239 = vpop.f32.mrf.mxu0
    %240 = vmatprep.mubr.bf16.mxu0 0
    %241 = vmatmul.mubr.bf16.gmra.mxu0 %v111
    %v242 = vpop.f32.mrf.mxu0
    %v243 = vadd.f32 %v78, %v242
    %v244 = vpop.f32.mrf.mxu0
    %v245 = vpop.f32.mrf.mxu0
    %v246 = vadd.f32 %v78, %v245
    %v247 = vpop.f32.mrf.mxu0
    %248 = vmatprep.mubr.bf16.mxu0 0
    %249 = vmatmul.mubr.bf16.gmra.mxu0 %v112
    %v250 = vpop.f32.mrf.mxu0
    %v251 = vadd.f32 %v78, %v250
    %v252 = vpop.f32.mrf.mxu0
    %v253 = vpop.f32.mrf.mxu0
    %v254 = vpop.f32.mrf.mxu0
    %255 = vdwg.mxu0
    %v256 = vmax.f32 %v203, 0.0
    %v257 = vmax.f32 %v206, 0.0
    %v258 = vmax.f32 %v211, 0.0
    %v259 = vmax.f32 %v214, 0.0
    %v260 = vmax.f32 %v219, 0.0
    %v261 = vmax.f32 %v222, 0.0
    %v262 = vmax.f32 %v227, 0.0
    %v263 = vmax.f32 %v230, 0.0
    %v264 = vmax.f32 %v235, 0.0
    %v265 = vmax.f32 %v238, 0.0
    %v266 = vmax.f32 %v243, 0.0
    %v267 = vmax.f32 %v246, 0.0
    %v268 = vmax.f32 %v251, 0.0
    %269 = vst [vmem:[#allocation7] sm:$0xff] %v256
    %270 = vst [vmem:[#allocation7 + $0x8] sm:$0xff] %v257
    %271 = vst [vmem:[#allocation7 + $0x10] sm:$0xff] %v258
    %272 = vst [vmem:[#allocation7 + $0x18] sm:$0xff] %v259
    %273 = vst [vmem:[#allocation7 + $0x20] sm:$0xff] %v260
    %274 = vst [vmem:[#allocation7 + $0x28] sm:$0xff] %v261
    %275 = vst [vmem:[#allocation7 + $0x30] sm:$0xff] %v262
    %276 = vst [vmem:[#allocation7 + $0x38] sm:$0xff] %v263
    %277 = vst [vmem:[#allocation7 + $0x40] sm:$0xff] %v264
    %278 = vst [vmem:[#allocation7 + $0x48] sm:$0xff] %v265
    %279 = vst [vmem:[#allocation7 + $0x50] sm:$0xff] %v266
    %280 = vst [vmem:[#allocation7 + $0x58] sm:$0xff] %v267
    %281 = vst [vmem:[#allocation7 + $0x60] sm:$0xff] %v268
    // Predicated region
    $region22: #{tpu_custom_call.1} parent=1 // pred_check
      _
    $region23: #{tpu_custom_call.1} parent=1 // pred_check_branch
      %283 = sbr.rel (0) target = $region25
    $region24: #{tpu_custom_call.1} parent=1 // pred_region
      %s285 = ssub.s32 1664, 1664
      %286 = vsyncadd [#allocation4], %s285
      %s287 = sshll.u32 [#allocation7], 4
      %s288 = int_to_ptr.vmem [resolvable:$true] %s287
      %293 = dma.vmem_to_hbm [thread:$0]  %s288, 1664, %s3, [#allocation4], 128, 128, 8
    $region25: #{tpu_custom_call.1} parent=1 // pred_fallthru
      _
    // Predicated region
    $region26: #{tpu_custom_call.1} parent=1 // pred_check
      _
    $region27: #{tpu_custom_call.1} parent=1 // pred_check_branch
      %295 = sbr.rel (0) target = $region29
    $region28: #{tpu_custom_call.1} parent=1 // pred_region
      %296 = dma.done [#allocation4], 1664
    $region29: #{tpu_custom_call.1} parent=1 // pred_fallthru
      _
    %297 = vsyncpa [#allocation3], 1
    %298 = vsyncpa [#allocation6], 1
    %299 = vsyncpa [#allocation4], 1

</llo_original>
